<compile_context>
chip_gen: v5e
topology: v5e:2x2
jax: 0.10.0
libtpu: 0.0.40
codegen_flags: <defaults>
</compile_context>

<pallas_src>
import jax
import jax.numpy as jnp
from jax.experimental import pallas as pl
from jax.experimental.pallas import tpu as pltpu


def _torch_squeeze_cat_shape(shape):
    """Output shape of torch split(1, dim=0) -> .squeeze() -> cat(dim=0)."""
    L = int(shape[0])
    squeezed = tuple(int(d) for d in shape[1:] if d != 1)
    if not squeezed:
        # Every slice squeezes to a 0-d tensor; torch.cat of 0-d tensors errors
        # for L > 1.  TODO(synk): degenerate all-size-1 trailing dims.
        return () if L == 1 else (L,)
    if L == 1:
        return squeezed
    return (L * squeezed[0],) + squeezed[1:]


def _pick_chunk_rows(rows, row_bytes, *, target_chunks=8,
                     min_chunk_bytes=1 << 20, max_chunk_bytes=256 << 20):
    """Rows per DMA chunk: ~target_chunks chunks, each a large contiguous copy.

    target_chunks=8 guarantees grid depth for v7x 2-TC sharding on large
    inputs; min_chunk_bytes keeps each DMA big enough to run at HBM bandwidth.
    """
    row_bytes = max(int(row_bytes), 1)
    target = -(-rows // target_chunks)                    # ceil-div
    min_rows = max(1, min_chunk_bytes // row_bytes)
    max_rows = max(min_rows, max_chunk_bytes // row_bytes)
    return max(1, min(max(min_rows, min(target, max_rows)), rows))


def _make_dma_copy_kernel(chunk_rows, num_full, tail_rows):
    """Grid step i DMAs rows [i*chunk, (i+1)*chunk) HBM->HBM; last step also
    copies the (statically sized) tail if rows % chunk_rows != 0."""

    def kernel(x_hbm, o_hbm, sem):
        i = pl.program_id(0)
        start = i * chunk_rows
        cp = pltpu.make_async_copy(
            x_hbm.at[pl.ds(start, chunk_rows)],
            o_hbm.at[pl.ds(start, chunk_rows)],
            sem.at[0],
        )
        cp.start()
        cp.wait()
        if tail_rows > 0:
            @pl.when(i == num_full - 1)
            def _():
                toff = num_full * chunk_rows          # static python int
                tcp = pltpu.make_async_copy(
                    x_hbm.at[pl.ds(toff, tail_rows)],
                    o_hbm.at[pl.ds(toff, tail_rows)],
                    sem.at[1],
                )
                tcp.start()
                tcp.wait()

    return kernel


def _pallas_copy_2d(flat, *, chunk_rows=None):
    """Identity copy of a (rows, F) array via direct HBM->HBM DMA."""
    rows, feat = flat.shape
    itemsize = jnp.dtype(flat.dtype).itemsize
    if chunk_rows is None:
        chunk_rows = _pick_chunk_rows(rows, feat * itemsize)
    chunk_rows = max(1, min(int(chunk_rows), rows))
    num_full = rows // chunk_rows
    tail_rows = rows - num_full * chunk_rows

    kernel = _make_dma_copy_kernel(chunk_rows, num_full, tail_rows)
    return pl.pallas_call(
        kernel,
        out_shape=jax.ShapeDtypeStruct((rows, feat), flat.dtype),
        grid_spec=pltpu.PrefetchScalarGridSpec(
            num_scalar_prefetch=0,
            grid=(num_full,),
            # Raw HBM refs; no auto BlockSpec DMA, no VMEM round trip.
            in_specs=[pl.BlockSpec(memory_space=pl.ANY)],
            out_specs=pl.BlockSpec(memory_space=pl.ANY),
            scratch_shapes=[pltpu.SemaphoreType.DMA((2,))],
        ),
        compiler_params=pltpu.CompilerParams(
            # Independent chunks -> shard across v7x's 2 TCs (no-op on v5e/v6e).
            dimension_semantics=("parallel",),
            has_side_effects=True,
        ),
        cost_estimate=pl.CostEstimate(
            flops=0, transcendentals=0,
            bytes_accessed=2 * rows * feat * itemsize,
        ),
    )(flat)


def rnn_preprocess(x, *, use_pallas=False, chunk_rows=None):
    """Equivalent of RNN_Preprocess.forward (split / squeeze / cat)."""
    out_shape = _torch_squeeze_cat_shape(x.shape)
    if not use_pallas or x.ndim < 2 or x.size == 0:
        # Optimal path (default, per review): the split/squeeze/cat is a
        # layout-preserving flatten -> free metadata-only reshape, no kernel.
        return jnp.reshape(x, out_shape)
    # Pallas path: explicit HBM->HBM materialization of the flattened array.
    flat = jnp.reshape(x, (-1, x.shape[-1]))          # free
    out2d = _pallas_copy_2d(flat, chunk_rows=chunk_rows)
    return jnp.reshape(out2d, out_shape)              # free


if __name__ == "__main__":
    # Shapes consistent with the module: seq L=4, batch N=8, feature F=128.
    L, N, F = 4, 8, 128
    key = jax.random.PRNGKey(0)
    x = jax.random.normal(key, (L, N, F), dtype=jnp.float32)

    # Reference semantics: concat of squeezed (N, F) slices == reshape (L*N, F).
    ref = jnp.reshape(x, (L * N, F))

    # 1) Default zero-copy path.
    y0 = jax.block_until_ready(rnn_preprocess(x))
    assert y0.shape == (L * N, F) and jnp.array_equal(y0, ref)

    # 2) Pallas HBM->HBM DMA path (single chunk at this small size).
    y1 = jax.block_until_ready(rnn_preprocess(x, use_pallas=True))
    assert y1.shape == (L * N, F) and jnp.array_equal(y1, ref)

    # 3) Pallas path with a non-dividing chunk size to exercise the tail DMA.
    y2 = jax.block_until_ready(rnn_preprocess(x, use_pallas=True, chunk_rows=7))
    assert y2.shape == (L * N, F) and jnp.array_equal(y2, ref)

    # 4) N == 1: torch .squeeze() also drops the batch dim -> rank-1 (L*F,).
    x1 = jax.random.normal(jax.random.PRNGKey(0), (L, 1, F), dtype=jnp.float32)
    y3 = jax.block_until_ready(rnn_preprocess(x1, use_pallas=True))
    assert y3.shape == (L * F,) and jnp.array_equal(y3, jnp.reshape(x1, (L * F,)))

    print("KERNEL_OK")
</pallas_src>

<mosaic_0001>
module attributes {stable_mosaic.version = 11 : i64} {
  func.func @kernel(%arg0: i32, %arg1: memref<32x128xf32, #tpu.memory_space<any>>, %arg2: memref<32x128xf32, #tpu.memory_space<any>>, %arg3: memref<2x!tpu.dma_semaphore, #tpu.memory_space<semaphore_mem>>) attributes {dimension_semantics = [#tpu.dimension_semantics<parallel>], iteration_bounds = array<i64: 1>, scalar_prefetch = 0 : i64, scratch_operands = 1 : i64, tpu.core_type = #tpu.core_type<tc>, window_params = [{}, {}]} {
    %c32_i32 = arith.constant 32 : i32
    %0 = arith.muli %arg0, %c32_i32 : i32
    %c0_i32 = arith.constant 0 : i32
    %c0_i32_0 = arith.constant 0 : i32
    %1 = tpu.memref_slice %arg1[%0, %c0_i32_0] : memref<32x128xf32, #tpu.memory_space<any>> -> memref<32x128xf32, #tpu.memory_space<any>>
    %c0_i32_1 = arith.constant 0 : i32
    %2 = tpu.memref_slice %arg2[%0, %c0_i32_1] : memref<32x128xf32, #tpu.memory_space<any>> -> memref<32x128xf32, #tpu.memory_space<any>>
    %3 = tpu.memref_slice %arg3[%c0_i32] : memref<2x!tpu.dma_semaphore, #tpu.memory_space<semaphore_mem>> -> memref<1x!tpu.dma_semaphore, #tpu.memory_space<semaphore_mem>>
    %4 = tpu.memref_squeeze %3 : memref<1x!tpu.dma_semaphore, #tpu.memory_space<semaphore_mem>> -> memref<!tpu.dma_semaphore, #tpu.memory_space<semaphore_mem>>
    tpu.enqueue_dma source(%1 : memref<32x128xf32, #tpu.memory_space<any>>) target(%2 : memref<32x128xf32, #tpu.memory_space<any>>) target_semaphore(%4 : memref<!tpu.dma_semaphore, #tpu.memory_space<semaphore_mem>>)
    %c0_i32_2 = arith.constant 0 : i32
    %c0_i32_3 = arith.constant 0 : i32
    %5 = tpu.memref_slice %arg1[%0, %c0_i32_3] : memref<32x128xf32, #tpu.memory_space<any>> -> memref<32x128xf32, #tpu.memory_space<any>>
    %c0_i32_4 = arith.constant 0 : i32
    %6 = tpu.memref_slice %arg2[%0, %c0_i32_4] : memref<32x128xf32, #tpu.memory_space<any>> -> memref<32x128xf32, #tpu.memory_space<any>>
    %7 = tpu.memref_slice %arg3[%c0_i32_2] : memref<2x!tpu.dma_semaphore, #tpu.memory_space<semaphore_mem>> -> memref<1x!tpu.dma_semaphore, #tpu.memory_space<semaphore_mem>>
    %8 = tpu.memref_squeeze %7 : memref<1x!tpu.dma_semaphore, #tpu.memory_space<semaphore_mem>> -> memref<!tpu.dma_semaphore, #tpu.memory_space<semaphore_mem>>
    tpu.wait_dma2 semaphore(%8 : memref<!tpu.dma_semaphore, #tpu.memory_space<semaphore_mem>>) src(%5 : memref<32x128xf32, #tpu.memory_space<any>>) dst(%6 : memref<32x128xf32, #tpu.memory_space<any>>)
    return
  }
}

</mosaic_0001>

<llo_original>
// kernel: tpu_custom_call.1
$region0: #{tpu_custom_call.1}
  #allocation0 [shape = 'u32[]', space=smem, size = 0x4, offset = 0x4, fixed_abs, tag = 'smem constant byte address 0x4 - core index']
  #allocation1 [shape = 'u32[72,128]{1,0:T(1,128)}', space=vmem, size = 0x9000, scoped, tag = 'internal scratch']
  #allocation2 [shape = 's32[2]{0}', space=sflag, size = 0x8, scoped, tag = 'scratch operand']
  #allocation3 [shape = 's32[]', space=sflag, size = 0x4, offset = 0, fixed_abs, tag = 'sflag constant byte address 0x0 - dummy sync flag']
  #allocation4 [shape = 'u32[0]{0}', space=smem, size = 0, offset = 0, fixed_abs, tag = 'smem constant byte address 0x0 - null']
  %s0 = inlined_call_operand.hbm [shape: f32[32,128], index: 0, kind: input, shape index: {}]
  %s1 = inlined_call_operand.hbm [shape: f32[32,128], index: 1, kind: output, shape index: {}]
  %s2 = sld [smem:[#allocation0]]
  $region2: #{tpu_custom_call.1} parent=0
    _
  %s4 = ssub.s32 1, %s2
  %s5 = scalar_select 0, %s4, %s2
  %s6 = smul.u32 0, 32
  %s7 = scalar_lea.hbm %s0, %s6
  %s8 = scalar_lea.hbm %s1, %s6
  %s10 = sshll.u32 1, 14
  %s11 = sxor.u32 4294967295, %s10
  %s13 = sshll.u32 %s7, 4
  %s14 = int_to_ptr.hbm [resolvable:$true] %s13
  %s15 = sshll.u32 %s8, 4
  %s16 = int_to_ptr.hbm [resolvable:$true] %s15
  %19 = dma.general %s14, 512, %s16, [#allocation2], [#allocation3], [#allocation4], 0, 0
  %s20 = smul.u32 32, 1
  %s21 = sshll.u32 %s20, 4
  %22 = dma.done [#allocation2], %s21
  %23 = vsyncmov [#allocation2]
  %s24 = vpop.sfrf %23
  %p25 = scmp.eq.s32.totalorder %s24, 0
  %p26 = pneg %p25
  %28 = shalt.err (%p26)
  %s29 = scalar_lea.sflag [#allocation2], 1
  %30 = vsyncmov %s29
  %s31 = vpop.sfrf %30
  %p32 = scmp.eq.s32.totalorder %s31, 0
  %p33 = pneg %p32
  %35 = shalt.err (%p33)

</llo_original>
